<compile_context>
chip_gen: v7x
topology: tpu7x:2x2x1
jax: 0.10.0
libtpu: 0.0.40
codegen_flags: <defaults>
</compile_context>

<pallas_src>
import functools

import jax
import jax.numpy as jnp
from jax import lax
from jax.experimental import pallas as pl
from jax.experimental.pallas import tpu as pltpu

BN_EPS = 1e-5


def _round_up(x: int, m: int) -> int:
    return (x + m - 1) // m * m


def block_linear_kernel(x_ref, w_ref, o_ref):
    # Linear (bias omitted: exactly cancelled by the BatchNorm mean subtraction below).
    # bf16 operands feed the MXU at full rate; accumulation is f32.
    h = jnp.dot(x_ref[...], w_ref[...], preferred_element_type=jnp.float32)

    # BatchNorm1d with track_running_stats=False and fixed affine (gamma=1, beta=0):
    # per-feature batch statistics, *biased* variance (PyTorch training semantics).
    # One-pass sum / sum-of-squares -> single cross-sublane (XLU) reduction pair.
    inv_n = jnp.float32(1.0 / h.shape[0])
    s1 = jnp.sum(h, axis=0, keepdims=True)
    s2 = jnp.sum(h * h, axis=0, keepdims=True)
    mean = s1 * inv_n
    var = jnp.maximum(s2 * inv_n - mean * mean, 0.0)  # clamp tiny negative cancellation
    h = (h - mean) * lax.rsqrt(var + BN_EPS)          # rsqrt -> EUP slot

    # ReLU
    h = jnp.maximum(h, 0.0)

    # Dropout p = 0.0 (argparse default) -> identity.
    # TODO(synk): for args.dropout > 0 in training mode, build the keep-mask in-kernel via
    # pltpu.prng_seed(seed + pl.program_id(0)) + pltpu.prng_random_bits and scale by 1/(1-p).
    o_ref[...] = h.astype(o_ref.dtype)


@functools.partial(jax.jit, static_argnames=("tn",))
def block_linear(x, w, b=None, *, tn=512):
    """x: (N, num_in) f32, w: (num_in, num_out) f32, b: (1, num_out) f32 or None.

    NOTE: with args.norm='batch_norm' (fixed affine, batch statistics) the linear bias is
    exactly cancelled by the mean subtraction, so `b` is accepted for interface parity
    but intentionally not used.
    """
    del b  # cancelled by BatchNorm mean subtraction
    N, K = x.shape
    K2, num_out = w.shape
    assert K == K2, (K, K2)

    # Pad the contraction dim to a lane multiple (MXU column utilization) and the feature
    # dim to a multiple of the tile. Padded output features are zeros and get sliced off.
    k_pad = _round_up(K, 128)
    tn_eff = min(tn, _round_up(num_out, 128))
    nout_pad = _round_up(num_out, tn_eff)

    x_p = jnp.pad(x, ((0, 0), (0, k_pad - K))).astype(jnp.bfloat16)
    w_p = jnp.pad(w, ((0, k_pad - K), (0, nout_pad - num_out))).astype(jnp.bfloat16)

    grid = (nout_pad // tn_eff,)

    cost = pl.CostEstimate(
        flops=2 * N * k_pad * nout_pad,
        transcendentals=nout_pad,  # one rsqrt per output feature
        bytes_accessed=(x_p.size * 2 + w_p.size * 2 + N * nout_pad * 4),
    )

    out = pl.pallas_call(
        block_linear_kernel,
        out_shape=jax.ShapeDtypeStruct((N, nout_pad), jnp.float32),
        grid=grid,
        in_specs=[
            # x block: constant index_map -> fetched once, resident across all feature tiles
            # (full batch is needed for the per-feature BN statistics).
            pl.BlockSpec((N, k_pad), lambda j: (0, 0)),
            # weight block: one lane-dense feature tile per grid step (double-buffered DMA).
            pl.BlockSpec((k_pad, tn_eff), lambda j: (0, j)),
        ],
        out_specs=pl.BlockSpec((N, tn_eff), lambda j: (0, j)),
        compiler_params=pltpu.CompilerParams(
            # Feature tiles are fully independent -> megacore-shard on v7x, no-op elsewhere.
            dimension_semantics=("parallel",),
            # Explicit scoped-VMEM budget, safe on v5e/v6e/v7x; tile cap keeps us well inside.
            vmem_limit_bytes=32 * 1024 * 1024,
        ),
        cost_estimate=cost,
    )(x_p, w_p)

    return out[:, :num_out]


if __name__ == "__main__":
    key = jax.random.PRNGKey(0)
    kx, kw, kb = jax.random.split(key, 3)

    N, num_in, num_out = 8, 32, 512

    x = jax.random.normal(kx, (N, num_in), dtype=jnp.float32)
    # Deterministic parameter init (mimics nn.Linear's uniform(-1/sqrt(fan_in), 1/sqrt(fan_in))).
    bound = 1.0 / jnp.sqrt(jnp.float32(num_in))
    w = jax.random.uniform(kw, (num_in, num_out), dtype=jnp.float32,
                           minval=-bound, maxval=bound)
    b = jax.random.uniform(kb, (1, num_out), dtype=jnp.float32,
                           minval=-bound, maxval=bound)

    # tn=256: lane-dense, 256-aligned for the v6e/v7x MXU, grid of 2 feature tiles.
    out = jax.block_until_ready(block_linear(x, w, b, tn=256))

    # Reference in plain JAX: same math as the PyTorch forward (bias INCLUDED here, which
    # also demonstrates that the kernel's bias elision is numerically equivalent).
    h_ref = jnp.dot(x.astype(jnp.bfloat16), w.astype(jnp.bfloat16),
                    preferred_element_type=jnp.float32) + b
    mean = jnp.mean(h_ref, axis=0, keepdims=True)
    var = jnp.mean((h_ref - mean) ** 2, axis=0, keepdims=True)
    h_ref = (h_ref - mean) * lax.rsqrt(var + BN_EPS)
    h_ref = jnp.maximum(h_ref, 0.0)

    assert out.shape == (N, num_out)
    assert jnp.allclose(out, h_ref, atol=1e-3, rtol=1e-3), \
        float(jnp.max(jnp.abs(out - h_ref)))
    print("KERNEL_OK")
</pallas_src>

<mosaic_0001>
module attributes {stable_mosaic.version = 11 : i64} {
  func.func @block_linear_kernel(%arg0: i32, %arg1: memref<8x128xbf16, #tpu.memory_space<vmem>>, %arg2: memref<128x256xbf16, #tpu.memory_space<vmem>>, %arg3: memref<8x256xf32, #tpu.memory_space<vmem>>) attributes {dimension_semantics = [#tpu.dimension_semantics<parallel>], iteration_bounds = array<i64: 2>, scalar_prefetch = 0 : i64, scratch_operands = 0 : i64, tpu.core_type = #tpu.core_type<tc>, window_params = [{pipeline_mode = #tpu.pipeline_mode<synchronous>, transform_indices = @transform_0, window_bounds = array<i64: 8, 128>}, {transform_indices = @transform_1, window_bounds = array<i64: 128, 256>}, {transform_indices = @transform_2, window_bounds = array<i64: 8, 256>}]} {
    %c0 = arith.constant 0 : index
    %c0_0 = arith.constant 0 : index
    %0 = vector.load %arg1[%c0, %c0_0] : memref<8x128xbf16, #tpu.memory_space<vmem>>, vector<8x128xbf16>
    %c0_1 = arith.constant 0 : index
    %c0_2 = arith.constant 0 : index
    %1 = vector.load %arg2[%c0_1, %c0_2] : memref<128x256xbf16, #tpu.memory_space<vmem>>, vector<128x256xbf16>
    %cst = arith.constant dense<0.000000e+00> : vector<8x256xf32>
    %2 = tpu.matmul %0, %1, %cst {dimension_numbers = #tpu.dot_dimension_numbers<[1], [0], [0], [1], [0, 0, 1, 1], [], []>} : vector<8x128xbf16>, vector<128x256xbf16>, vector<8x256xf32> -> vector<8x256xf32>
    %cst_3 = arith.constant dense<0.000000e+00> : vector<256xf32>
    %3 = vector.multi_reduction <add>, %2, %cst_3 [0] : vector<8x256xf32> to vector<256xf32>
    %4 = vector.shape_cast %3 : vector<256xf32> to vector<1x256xf32>
    %5 = arith.mulf %2, %2 : vector<8x256xf32>
    %cst_4 = arith.constant dense<0.000000e+00> : vector<256xf32>
    %6 = vector.multi_reduction <add>, %5, %cst_4 [0] : vector<8x256xf32> to vector<256xf32>
    %7 = vector.shape_cast %6 : vector<256xf32> to vector<1x256xf32>
    %cst_5 = arith.constant 1.250000e-01 : f32
    %8 = vector.broadcast %cst_5 : f32 to vector<1x256xf32>
    %9 = arith.mulf %4, %8 : vector<1x256xf32>
    %cst_6 = arith.constant 1.250000e-01 : f32
    %10 = vector.broadcast %cst_6 : f32 to vector<1x256xf32>
    %11 = arith.mulf %7, %10 : vector<1x256xf32>
    %12 = arith.mulf %9, %9 : vector<1x256xf32>
    %13 = arith.subf %11, %12 : vector<1x256xf32>
    %cst_7 = arith.constant 0.000000e+00 : f32
    %14 = vector.broadcast %cst_7 : f32 to vector<1x256xf32>
    %15 = arith.maximumf %13, %14 : vector<1x256xf32>
    %16 = vector.broadcast %9 : vector<1x256xf32> to vector<8x256xf32>
    %17 = arith.subf %2, %16 : vector<8x256xf32>
    %cst_8 = arith.constant 9.99999974E-6 : f32
    %18 = vector.broadcast %cst_8 : f32 to vector<1x256xf32>
    %19 = arith.addf %15, %18 : vector<1x256xf32>
    %20 = math.rsqrt %19 : vector<1x256xf32>
    %21 = vector.broadcast %20 : vector<1x256xf32> to vector<8x256xf32>
    %22 = arith.mulf %17, %21 : vector<8x256xf32>
    %cst_9 = arith.constant 0.000000e+00 : f32
    %23 = vector.broadcast %cst_9 : f32 to vector<8x256xf32>
    %24 = arith.maximumf %22, %23 : vector<8x256xf32>
    %c0_10 = arith.constant 0 : index
    %c0_11 = arith.constant 0 : index
    %25 = vector.load %arg3[%c0_10, %c0_11] : memref<8x256xf32, #tpu.memory_space<vmem>>, vector<8x256xf32>
    tpu.vector_store %arg3[%c0_10, %c0_11], %24 {strides = array<i32>} : memref<8x256xf32, #tpu.memory_space<vmem>>, vector<8x256xf32>,
    return
  }
  func.func @transform_0(%arg0: i32) -> (i32, i32) {
    %c0_i32 = arith.constant 0 : i32
    %c0_i32_0 = arith.constant 0 : i32
    %c0_i32_1 = arith.constant 0 : i32
    return %c0_i32, %c0_i32_0 : i32, i32
  }
  func.func @transform_1(%arg0: i32) -> (i32, i32) {
    %c0_i32 = arith.constant 0 : i32
    %c0_i32_0 = arith.constant 0 : i32
    return %c0_i32, %arg0 : i32, i32
  }
  func.func @transform_2(%arg0: i32) -> (i32, i32) {
    %c0_i32 = arith.constant 0 : i32
    %c0_i32_0 = arith.constant 0 : i32
    return %c0_i32, %arg0 : i32, i32
  }
}

</mosaic_0001>

<llo_original>
// kernel: block_linear.1
$region0: #{block_linear.1}
  #allocation0 [shape = 'u32[]', space=smem, size = 0x4, offset = 0x4, fixed_abs, tag = 'smem constant byte address 0x4 - core index']
  #allocation1 [shape = 'u32[144,128]{1,0:T(1,128)}', space=vmem, size = 0x12000, scoped, tag = 'internal scratch']
  %s0 = inlined_call_operand.vmem [shape: bf16[8,128], index: 0, kind: input, shape index: {}]
  %s1 = inlined_call_operand.vmem [shape: bf16[128,512], index: 1, kind: input, shape index: {}]
  %s2 = inlined_call_operand.hbm [shape: f32[8,512], index: 2, kind: output, shape index: {}]
  %s3 = sld [smem:[#allocation0]]
  $region79: #{block_linear.1} parent=0
    _
  %s5 = ssub.s32 1, %s3
  %s6 = scalar_select 0, %s5, %s3
  $region1: #{block_linear.1} parent=0
    #allocation2 [shape = 'u8[131072]{0}', space=vmem, size = 0x20000, scoped, tag = 'input window, operand 1']
    #allocation3 [shape = 'u8[16384]{0}', space=vmem, size = 0x4000, scoped, tag = 'output window, operand 0']
    #allocation4 [shape = 's32[2]{0}', space=sflag, size = 0x8, scoped, tag = 'scoped memory for block_linear.1']
    %7 = vsyncpa [#allocation4], 0
    %s8 = scalar_lea.sflag [#allocation4], 1
    %9 = vsyncpa %s8, 0
    loop: start=0, step=1, limit=4
    $region2: #{block_linear.1} parent=1 // loop_pre_header
      _
    $region3: #{block_linear.1} parent=1 // loop_header
      %s11 = sphi 0, %s15
      %p12 = scmp.ge.s32.totalorder %s11, 4
      %s19 = sphi 0, %s19
      %s21 = sphi 0, %s19
      %s22 = sphi 0, %s21
      %s36 = sphi 0, %s22
      %s42 = sphi 0, %s44
      %s45 = sphi 0, %s42
      %s46 = sphi 0, %s45
      %s62 = sphi 0, %s46
      %s68 = sphi 0, %s70
      %s71 = sphi 0, %s68
      %s72 = sphi 0, %s71
      %s88 = sphi 0, %s72
    $region4: #{block_linear.1} parent=1 // loop_header_branch
      %14 = sbr.rel (%p12) target = $region8
    $region5: #{block_linear.1} parent=1 // loop_body
      %s16 = ssub.s32 %s11, 1
      %s17 = ssub.s32 %s11, 2
      %s18 = sadd.s32 %s11, 1
      %s20 = sadd.s32 %s19, 1
      %p23 = scmp.eq.s32.totalorder %s11, 1
      %p24 = scmp.ne.s32.totalorder %s19, %s21
      %p25 = scmp.eq.s32.totalorder %s11, 0
      %p26 = por %p24, %p25
      %p27 = scmp.ne.s32.totalorder %s19, %s21
      %p28 = scmp.eq.s32.totalorder %s16, 1
      %p29 = por %p27, %p28
      %p30 = scmp.ne.s32.totalorder %s21, %s22
      %p31 = scmp.eq.s32.totalorder %s16, 0
      %p32 = por %p30, %p31
      %p33 = scmp.ne.s32.totalorder %s21, %s22
      %p34 = scmp.eq.s32.totalorder %s17, 1
      %p35 = por %p33, %p34
      %p37 = scmp.ne.s32.totalorder %s22, %s36
      %p38 = scmp.eq.s32.totalorder %s17, 0
      %p39 = por %p37, %p38
      %s40 = ssub.s32 %s11, %s18
      %p41 = scmp.eq.s32.totalorder %s40, 0
      %s43 = sadd.s32 %s42, 1
      %s44 = scalar_select %p41, %s42, %s43
      %p47 = pneg %p41
      %p48 = scmp.eq.s32.totalorder %s11, 1
      %p49 = por %p47, %p48
      %p50 = scmp.ne.s32.totalorder %s42, %s45
      %p51 = scmp.eq.s32.totalorder %s11, 0
      %p52 = por %p50, %p51
      %p53 = scmp.ne.s32.totalorder %s42, %s45
      %p54 = scmp.eq.s32.totalorder %s16, 1
      %p55 = por %p53, %p54
      %p56 = scmp.ne.s32.totalorder %s45, %s46
      %p57 = scmp.eq.s32.totalorder %s16, 0
      %p58 = por %p56, %p57
      %p59 = scmp.ne.s32.totalorder %s45, %s46
      %p60 = scmp.eq.s32.totalorder %s17, 1
      %p61 = por %p59, %p60
      %p63 = scmp.ne.s32.totalorder %s46, %s62
      %p64 = scmp.eq.s32.totalorder %s17, 0
      %p65 = por %p63, %p64
      %s66 = ssub.s32 %s11, %s18
      %p67 = scmp.eq.s32.totalorder %s66, 0
      %s69 = sadd.s32 %s68, 1
      %s70 = scalar_select %p67, %s68, %s69
      %p73 = pneg %p67
      %p74 = scmp.eq.s32.totalorder %s11, 1
      %p75 = por %p73, %p74
      %p76 = scmp.ne.s32.totalorder %s68, %s71
      %p77 = scmp.eq.s32.totalorder %s11, 0
      %p78 = por %p76, %p77
      %p79 = scmp.ne.s32.totalorder %s68, %s71
      %p80 = scmp.eq.s32.totalorder %s16, 1
      %p81 = por %p79, %p80
      %p82 = scmp.ne.s32.totalorder %s71, %s72
      %p83 = scmp.eq.s32.totalorder %s16, 0
      %p84 = por %p82, %p83
      %p85 = scmp.ne.s32.totalorder %s71, %s72
      %p86 = scmp.eq.s32.totalorder %s17, 1
      %p87 = por %p85, %p86
      %p89 = scmp.ne.s32.totalorder %s72, %s88
      %p90 = scmp.eq.s32.totalorder %s17, 0
      %p91 = por %p89, %p90
      %p92 = scmp.le.s32.totalorder 1, %s11
      %p93 = scmp.lt.s32.totalorder %s11, 3
      %p94 = pnand %p92, %p93
      %p95 = pneg %p94
      // Predicated region
      $region9: #{block_linear.1} parent=5 // pred_check
        _
      $region10: #{block_linear.1} parent=5 // pred_check_branch
        %97 = sbr.rel (%p94) target = $region12
      $region11: #{block_linear.1} parent=5 // pred_region
        %s98 = ssub.s32 %s11, 1
        // Predicated region
        $region13: #{block_linear.1} parent=11 // pred_check
          %p99 = pneg %p32
        $region14: #{block_linear.1} parent=11 // pred_check_branch
          %101 = sbr.rel (%p99) target = $region16
        $region15: #{block_linear.1} parent=11 // pred_region
          _
        $region16: #{block_linear.1} parent=11 // pred_fallthru
          _
      $region12: #{block_linear.1} parent=5 // pred_fallthru
        _
      %p102 = scmp.lt.s32.totalorder %s11, 2
      // Predicated region
      $region17: #{block_linear.1} parent=5 // pred_check
        %p103 = pneg %p102
      $region18: #{block_linear.1} parent=5 // pred_check_branch
        %105 = sbr.rel (%p103) target = $region20
      $region19: #{block_linear.1} parent=5 // pred_region
        // Predicated region
        $region21: #{block_linear.1} parent=19 // pred_check
          %p106 = pneg %p52
        $region22: #{block_linear.1} parent=19 // pred_check_branch
          %108 = sbr.rel (%p106) target = $region24
        $region23: #{block_linear.1} parent=19 // pred_region
          %s109 = sand.u32 %s42, 1
          %s110 = sand.u32 %s42, 1
          %s111 = smul.addr %s110, 128
          %s112 = scalar_lea.vmem [#allocation2], %s111
          %s113 = smul.u32 2, %s11
          %s114 = smul.addr %s113, 4
          %s115 = scalar_lea.vmem %s1, %s114
          // Predicated region
          $region25: #{block_linear.1} parent=23 // pred_check
            _
          $region26: #{block_linear.1} parent=23 // pred_check_branch
            %117 = sbr.rel (0) target = $region28
          $region27: #{block_linear.1} parent=23 // pred_region
            // Predicated region
            $region29: #{block_linear.1} parent=27 // pred_check
              _
            $region30: #{block_linear.1} parent=27 // pred_check_branch
              %119 = sbr.rel (0) target = $region32
            $region31: #{block_linear.1} parent=27 // pred_region
              // Predicated region
              $region44: #{block_linear.1} parent=31 // pred_check
                _
              $region45: #{block_linear.1} parent=31 // pred_check_branch
                %164 = sbr.rel (0) target = $region47
              $region46: #{block_linear.1} parent=31 // pred_region
                loop: start=0, step=1, limit=1
                $region48: #{block_linear.1} parent=46 // loop_pre_header
                  _
                $region49: #{block_linear.1} parent=46 // loop_header
                  %s166 = sphi 0, %s170
                  %p167 = scmp.ge.s32.totalorder %s166, 1
                  %s171 = sphi %s115, %s115
                  %s172 = sphi %s112, %s112
                $region50: #{block_linear.1} parent=46 // loop_header_branch
                  %169 = sbr.rel (%p167) target = $region54
                $region51: #{block_linear.1} parent=46 // loop_body
                  %v173 = vld [vmem:[%s171] sm:$0xff]
                  %174 = vst [vmem:[%s172] sm:$0xff] %v173
                  %v175 = vld [vmem:[%s171 + $0x10] sm:$0xff]
                  %176 = vst [vmem:[%s172 + $0x8] sm:$0xff] %v175
                  %v177 = vld [vmem:[%s171 + $0x20] sm:$0xff]
                  %178 = vst [vmem:[%s172 + $0x10] sm:$0xff] %v177
                  %v179 = vld [vmem:[%s171 + $0x30] sm:$0xff]
                  %180 = vst [vmem:[%s172 + $0x18] sm:$0xff] %v179
                  %v181 = vld [vmem:[%s171 + $0x40] sm:$0xff]
                  %182 = vst [vmem:[%s172 + $0x20] sm:$0xff] %v181
                  %v183 = vld [vmem:[%s171 + $0x50] sm:$0xff]
                  %184 = vst [vmem:[%s172 + $0x28] sm:$0xff] %v183
                  %v185 = vld [vmem:[%s171 + $0x60] sm:$0xff]
                  %186 = vst [vmem:[%s172 + $0x30] sm:$0xff] %v185
                  %v187 = vld [vmem:[%s171 + $0x70] sm:$0xff]
                  %188 = vst [vmem:[%s172 + $0x38] sm:$0xff] %v187
                  %v189 = vld [vmem:[%s171 + $0x80] sm:$0xff]
                  %190 = vst [vmem:[%s172 + $0x40] sm:$0xff] %v189
                  %v191 = vld [vmem:[%s171 + $0x90] sm:$0xff]
                  %192 = vst [vmem:[%s172 + $0x48] sm:$0xff] %v191
                  %v193 = vld [vmem:[%s171 + $0xa0] sm:$0xff]
                  %194 = vst [vmem:[%s172 + $0x50] sm:$0xff] %v193
                  %v195 = vld [vmem:[%s171 + $0xb0] sm:$0xff]
                  %196 = vst [vmem:[%s172 + $0x58] sm:$0xff] %v195
                  %v197 = vld [vmem:[%s171 + $0xc0] sm:$0xff]
                  %198 = vst [vmem:[%s172 + $0x60] sm:$0xff] %v197
                  %v199 = vld [vmem:[%s171 + $0xd0] sm:$0xff]
                  %200 = vst [vmem:[%s172 + $0x68] sm:$0xff] %v199
                  %v201 = vld [vmem:[%s171 + $0xe0] sm:$0xff]
                  %202 = vst [vmem:[%s172 + $0x70] sm:$0xff] %v201
                  %v203 = vld [vmem:[%s171 + $0xf0] sm:$0xff]
                  %204 = vst [vmem:[%s172 + $0x78] sm:$0xff] %v203
                $region52: #{block_linear.1} parent=46 // loop_footer
                  %s170 = sadd.s32 1, %s166
                $region53: #{block_linear.1} parent=46 // loop_footer_branch
                  %165 = sbr.rel target = $region49
                $region54: #{block_linear.1} parent=46 // loop_exit
                  _
              $region47: #{block_linear.1} parent=31 // pred_fallthru
                _
              // Predicated region
              $region55: #{block_linear.1} parent=31 // pred_check
                _
              $region56: #{block_linear.1} parent=31 // pred_check_branch
                %206 = sbr.rel target = $region58
              $region57: #{block_linear.1} parent=31 // pred_region
                _
              $region58: #{block_linear.1} parent=31 // pred_fallthru
                _
            $region32: #{block_linear.1} parent=27 // pred_fallthru
              _
            // Predicated region
            $region33: #{block_linear.1} parent=27 // pred_check
              _
            $region34: #{block_linear.1} parent=27 // pred_check_branch
              %121 = sbr.rel target = $region36
            $region35: #{block_linear.1} parent=27 // pred_region
              loop: start=0, step=1, limit=1
              $region37: #{block_linear.1} parent=35 // loop_pre_header
                _
              $region38: #{block_linear.1} parent=35 // loop_header
                %s124 = sphi 0, %s128
                %p125 = scmp.ge.s32.totalorder %s124, 1
                %s129 = sphi %s115, %s115
                %s130 = sphi %s112, %s112
              $region39: #{block_linear.1} parent=35 // loop_header_branch
                %127 = sbr.rel (%p125) target = $region43
              $region40: #{block_linear.1} parent=35 // loop_body
                %v131 = vld [vmem:[%s129] sm:$0xff]
                %132 = vst [vmem:[%s130] sm:$0xff] %v131
                %v133 = vld [vmem:[%s129 + $0x10] sm:$0xff]
                %134 = vst [vmem:[%s130 + $0x8] sm:$0xff] %v133
                %v135 = vld [vmem:[%s129 + $0x20] sm:$0xff]
                %136 = vst [vmem:[%s130 + $0x10] sm:$0xff] %v135
                %v137 = vld [vmem:[%s129 + $0x30] sm:$0xff]
                %138 = vst [vmem:[%s130 + $0x18] sm:$0xff] %v137
                %v139 = vld [vmem:[%s129 + $0x40] sm:$0xff]
                %140 = vst [vmem:[%s130 + $0x20] sm:$0xff] %v139
                %v141 = vld [vmem:[%s129 + $0x50] sm:$0xff]
                %142 = vst [vmem:[%s130 + $0x28] sm:$0xff] %v141
                %v143 = vld [vmem:[%s129 + $0x60] sm:$0xff]
                %144 = vst [vmem:[%s130 + $0x30] sm:$0xff] %v143
                %v145 = vld [vmem:[%s129 + $0x70] sm:$0xff]
                %146 = vst [vmem:[%s130 + $0x38] sm:$0xff] %v145
                %v147 = vld [vmem:[%s129 + $0x80] sm:$0xff]
                %148 = vst [vmem:[%s130 + $0x40] sm:$0xff] %v147
                %v149 = vld [vmem:[%s129 + $0x90] sm:$0xff]
                %150 = vst [vmem:[%s130 + $0x48] sm:$0xff] %v149
                %v151 = vld [vmem:[%s129 + $0xa0] sm:$0xff]
                %152 = vst [vmem:[%s130 + $0x50] sm:$0xff] %v151
                %v153 = vld [vmem:[%s129 + $0xb0] sm:$0xff]
                %154 = vst [vmem:[%s130 + $0x58] sm:$0xff] %v153
                %v155 = vld [vmem:[%s129 + $0xc0] sm:$0xff]
                %156 = vst [vmem:[%s130 + $0x60] sm:$0xff] %v155
                %v157 = vld [vmem:[%s129 + $0xd0] sm:$0xff]
                %158 = vst [vmem:[%s130 + $0x68] sm:$0xff] %v157
                %v159 = vld [vmem:[%s129 + $0xe0] sm:$0xff]
                %160 = vst [vmem:[%s130 + $0x70] sm:$0xff] %v159
                %v161 = vld [vmem:[%s129 + $0xf0] sm:$0xff]
                %162 = vst [vmem:[%s130 + $0x78] sm:$0xff] %v161
              $region41: #{block_linear.1} parent=35 // loop_footer
                %s128 = sadd.s32 1, %s124
              $region42: #{block_linear.1} parent=35 // loop_footer_branch
                %123 = sbr.rel target = $region38
              $region43: #{block_linear.1} parent=35 // loop_exit
                _
            $region36: #{block_linear.1} parent=27 // pred_fallthru
              _
          $region28: #{block_linear.1} parent=23 // pred_fallthru
            _
          %207 = vnop
        $region24: #{block_linear.1} parent=19 // pred_fallthru
          _
      $region20: #{block_linear.1} parent=5 // pred_fallthru
        _
      %p208 = scmp.le.s32.totalorder 1, %s11
      %p209 = scmp.lt.s32.totalorder %s11, 3
      %p210 = pnand %p208, %p209
      %p211 = pneg %p210
      // Predicated region
      $region59: #{block_linear.1} parent=5 // pred_check
        _
      $region60: #{block_linear.1} parent=5 // pred_check_branch
        %213 = sbr.rel (%p210) target = $region62
      $region61: #{block_linear.1} parent=5 // pred_region
        %s214 = ssub.s32 %s11, 1
        %s215 = sand.u32 %s45, 1
        %s216 = sand.u32 %s45, 1
        %s217 = smul.addr %s216, 128
        %s218 = scalar_lea.vmem [#allocation2], %s217
        // Predicated region
        $region63: #{block_linear.1} parent=61 // pred_check
          %p219 = pneg %p58
        $region64: #{block_linear.1} parent=61 // pred_check_branch
          %221 = sbr.rel (%p219) target = $region66
        $region65: #{block_linear.1} parent=61 // pred_region
          _
        $region66: #{block_linear.1} parent=61 // pred_fallthru
          _
        %p222 = pneg %p32
        %p223 = pneg %p29
        %s224 = sand.u32 %s45, 1
        %s225 = sand.u32 %s45, 1
        %s226 = smul.addr %s225, 128
        %s227 = scalar_lea.vmem [#allocation2], %s226
        %p228 = pneg %p58
        %p229 = pneg %p55
        %p230 = pneg %p84
        %p231 = pneg %p81
        %s232 = sand.u32 %s71, 1
        %s233 = scalar_lea.sflag [#allocation4], %s232
        %s234 = sand.u32 %s71, 1
        %s235 = smul.addr %s234, 16
        %s236 = scalar_lea.vmem [#allocation3], %s235
        %s237 = smul.u32 2, %s16
        %s238 = smul.u32 2, %s16
        %v240 = vld [vmem:[%s0] sm:$0xf]
        %v241 = vld [vmem:[%s218] sm:$0xff]
        %v242 = vld [vmem:[%s218 + $0x8] sm:$0xff]
        %v243 = vld [vmem:[%s218 + $0x10] sm:$0xff]
        %v244 = vld [vmem:[%s218 + $0x18] sm:$0xff]
        %v245 = vld [vmem:[%s218 + $0x20] sm:$0xff]
        %v246 = vld [vmem:[%s218 + $0x28] sm:$0xff]
        %v247 = vld [vmem:[%s218 + $0x30] sm:$0xff]
        %v248 = vld [vmem:[%s218 + $0x38] sm:$0xff]
        %v249 = vld [vmem:[%s218 + $0x40] sm:$0xff]
        %v250 = vld [vmem:[%s218 + $0x48] sm:$0xff]
        %v251 = vld [vmem:[%s218 + $0x50] sm:$0xff]
        %v252 = vld [vmem:[%s218 + $0x58] sm:$0xff]
        %v253 = vld [vmem:[%s218 + $0x60] sm:$0xff]
        %v254 = vld [vmem:[%s218 + $0x68] sm:$0xff]
        %v255 = vld [vmem:[%s218 + $0x70] sm:$0xff]
        %v256 = vld [vmem:[%s218 + $0x78] sm:$0xff]
        %v273 = vunpack.c.l.b16 %v241
        %v274 = vunpack.c.h.b16 %v241
        %v275 = vunpack.c.l.b16 %v242
        %v276 = vunpack.c.h.b16 %v242
        %v277 = vunpack.c.l.b16 %v243
        %v278 = vunpack.c.h.b16 %v243
        %v279 = vunpack.c.l.b16 %v244
        %v280 = vunpack.c.h.b16 %v244
        %v281 = vunpack.c.l.b16 %v245
        %v282 = vunpack.c.h.b16 %v245
        %v283 = vunpack.c.l.b16 %v246
        %v284 = vunpack.c.h.b16 %v246
        %v285 = vunpack.c.l.b16 %v247
        %v286 = vunpack.c.h.b16 %v247
        %v287 = vunpack.c.l.b16 %v248
        %v288 = vunpack.c.h.b16 %v248
        %v289 = vunpack.c.l.b16 %v249
        %v290 = vunpack.c.h.b16 %v249
        %v291 = vunpack.c.l.b16 %v250
        %v292 = vunpack.c.h.b16 %v250
        %v293 = vunpack.c.l.b16 %v251
        %v294 = vunpack.c.h.b16 %v251
        %v295 = vunpack.c.l.b16 %v252
        %v296 = vunpack.c.h.b16 %v252
        %v297 = vunpack.c.l.b16 %v253
        %v298 = vunpack.c.h.b16 %v253
        %v299 = vunpack.c.l.b16 %v254
        %v300 = vunpack.c.h.b16 %v254
        %v301 = vunpack.c.l.b16 %v255
        %v302 = vunpack.c.h.b16 %v255
        %v303 = vunpack.c.l.b16 %v256
        %v304 = vunpack.c.h.b16 %v256
        %v305 = vpack.c.b16 %v275, %v273
        %v306 = vpack.c.b16 %v276, %v274
        %v307 = vpack.c.b16 %v279, %v277
        %v308 = vpack.c.b16 %v280, %v278
        %v309 = vpack.c.b16 %v283, %v281
        %v310 = vpack.c.b16 %v284, %v282
        %v311 = vpack.c.b16 %v287, %v285
        %v312 = vpack.c.b16 %v288, %v286
        %v313 = vpack.c.b16 %v291, %v289
        %v314 = vpack.c.b16 %v292, %v290
        %v315 = vpack.c.b16 %v295, %v293
        %v316 = vpack.c.b16 %v296, %v294
        %v317 = vpack.c.b16 %v299, %v297
        %v318 = vpack.c.b16 %v300, %v298
        %v319 = vpack.c.b16 %v303, %v301
        %v320 = vpack.c.b16 %v304, %v302
        %337 = vmatprep.subr.bf16.mxu0 %v306
        %338 = vmatpush1.bf16.msra.mxu0 %v305
        %339 = vmatprep.subr.bf16.mxu0 %v308
        %340 = vmatpush1.bf16.msra.mxu0 %v307
        %341 = vmatprep.subr.bf16.mxu0 %v310
        %342 = vmatpush1.bf16.msra.mxu0 %v309
        %343 = vmatprep.subr.bf16.mxu0 %v312
        %344 = vmatpush1.bf16.msra.mxu0 %v311
        %345 = vmatprep.subr.bf16.mxu0 %v314
        %346 = vmatpush1.bf16.msra.mxu0 %v313
        %347 = vmatprep.subr.bf16.mxu0 %v316
        %348 = vmatpush1.bf16.msra.mxu0 %v315
        %349 = vmatprep.subr.bf16.mxu0 %v318
        %350 = vmatpush1.bf16.msra.mxu0 %v317
        %351 = vmatprep.subr.bf16.mxu0 %v320
        %352 = vmatpush1.bf16.msra.mxu0 %v319
        %353 = vmatprep.subr.bf16.mxu0 0
        %354 = vmatpush1.bf16.msra.mxu0 0
        %355 = vmatprep.subr.bf16.mxu0 0
        %356 = vmatpush1.bf16.msra.mxu0 0
        %357 = vmatprep.subr.bf16.mxu0 0
        %358 = vmatpush1.bf16.msra.mxu0 0
        %359 = vmatprep.subr.bf16.mxu0 0
        %360 = vmatpush1.bf16.msra.mxu0 0
        %361 = vmatprep.subr.bf16.mxu0 0
        %362 = vmatpush1.bf16.msra.mxu0 0
        %363 = vmatprep.subr.bf16.mxu0 0
        %364 = vmatpush1.bf16.msra.mxu0 0
        %365 = vmatprep.subr.bf16.mxu0 0
        %366 = vmatpush1.bf16.msra.mxu0 0
        %367 = vmatprep.subr.bf16.mxu0 0
        %368 = vmatpush1.bf16.msra.mxu0 0
        %369 = vmatprep.mubr.bf16.mxu0 0
        %370 = vmatmul.mubr.bf16.gmra.mrb[0].mxu0 %v240
        %v371 = vpop.f32.mrb[0].mxu0
        %v372 = vadd.f32 0.0, %v371
        %v373 = vpop.f32.mrb[0].mxu0
        %v374 = vadd.f32 0.0, %v373
        %v375 = vpop.f32.mrb[0].mxu0
        %v376 = vpop.f32.mrb[0].mxu0
        %377 = vdwg.mxu0
        %v378 = vrot.slane %v372, 4
        %v379 = vadd.f32 %v372, %v378
        %v380 = vrot.slane %v379, 2
        %v381 = vadd.f32 %v379, %v380
        %v382 = vrot.slane %v381, 1
        %v383 = vadd.f32 %v381, %v382
        %v384 = vrot.slane %v374, 4
        %v385 = vadd.f32 %v374, %v384
        %v386 = vrot.slane %v385, 2
        %v387 = vadd.f32 %v385, %v386
        %v388 = vrot.slane %v387, 1
        %v389 = vadd.f32 %v387, %v388
        %v390 = vmul.f32 %v372, %v372
        %v391 = vmul.f32 %v374, %v374
        %v392 = vrot.slane %v390, 4
        %v393 = vadd.f32 %v390, %v392
        %v394 = vrot.slane %v393, 2
        %v395 = vadd.f32 %v393, %v394
        %v396 = vrot.slane %v395, 1
        %v397 = vadd.f32 %v395, %v396
        %v398 = vrot.slane %v391, 4
        %v399 = vadd.f32 %v391, %v398
        %v400 = vrot.slane %v399, 2
        %v401 = vadd.f32 %v399, %v400
        %v402 = vrot.slane %v401, 1
        %v403 = vadd.f32 %v401, %v402
        %v404 = vmul.f32 %v383, 0.125
        %v405 = vmul.f32 %v389, 0.125
        %v406 = vmul.f32 %v397, 0.125
        %v407 = vmul.f32 %v403, 0.125
        %v408 = vmul.f32 %v404, %v404
        %v409 = vmul.f32 %v405, %v405
        %v410 = vsub.f32 %v406, %v408
        %v411 = vsub.f32 %v407, %v409
        %v412 = vmax.f32 %v410, 0.0
        %v413 = vmax.f32 %v411, 0.0
        %v414 = vsub.f32 %v372, %v404
        %v415 = vsub.f32 %v374, %v405
        %v416 = vadd.f32 %v412, 1e-05
        %v417 = vadd.f32 %v413, 1e-05
        %v418 = vrsqrt.pop %v416
        %v419 = vrsqrt.pop %v417
        %v420 = vmul.f32 %v414, %v418
        %v421 = vmul.f32 %v415, %v419
        %v422 = vmax.f32 %v420, 0.0
        %v423 = vmax.f32 %v421, 0.0
        %424 = vst [vmem:[%s236] sm:$0xff] %v422
        %425 = vst [vmem:[%s236 + $0x8] sm:$0xff] %v423
        %s426 = sand.u32 %s71, 1
        %s427 = scalar_lea.sflag [#allocation4], %s426
        %s428 = sand.u32 %s71, 1
        %s429 = smul.addr %s428, 16
        %s430 = scalar_lea.vmem [#allocation3], %s429
        // Predicated region
        $region67: #{block_linear.1} parent=61 // pred_check
          %p431 = pneg %p81
        $region68: #{block_linear.1} parent=61 // pred_check_branch
          %433 = sbr.rel (%p431) target = $region70
        $region69: #{block_linear.1} parent=61 // pred_region
          %s434 = smul.u32 2, %s16
          %s436 = ssub.s32 256, 256
          %437 = vsyncadd %s427, %s436
          %s438 = smul.addr %s434, 128
          %s439 = scalar_lea.hbm %s2, %s438
          %s441 = sshll.u32 %s430, 4
          %s442 = int_to_ptr.vmem [resolvable:$true] %s441
          %444 = dma.vmem_to_hbm [thread:$0]  %s442, 256, %s439, %s427
        $region70: #{block_linear.1} parent=61 // pred_fallthru
          _
      $region62: #{block_linear.1} parent=5 // pred_fallthru
        _
      %p445 = scmp.le.s32.totalorder 2, %s11
      // Predicated region
      $region71: #{block_linear.1} parent=5 // pred_check
        %p446 = pneg %p445
      $region72: #{block_linear.1} parent=5 // pred_check_branch
        %448 = sbr.rel (%p446) target = $region74
      $region73: #{block_linear.1} parent=5 // pred_region
        %s449 = ssub.s32 %s11, 2
        // Predicated region
        $region75: #{block_linear.1} parent=73 // pred_check
          %p450 = pneg %p87
        $region76: #{block_linear.1} parent=73 // pred_check_branch
          %452 = sbr.rel (%p450) target = $region78
        $region77: #{block_linear.1} parent=73 // pred_region
          %s453 = sand.u32 %s72, 1
          %s454 = scalar_lea.sflag [#allocation4], %s453
          %s455 = sand.u32 %s72, 1
          %s456 = smul.addr %s455, 16
          %s457 = scalar_lea.vmem [#allocation3], %s456
          %458 = dma.done %s454, 256
        $region78: #{block_linear.1} parent=73 // pred_fallthru
          _
      $region74: #{block_linear.1} parent=5 // pred_fallthru
        _
    $region6: #{block_linear.1} parent=1 // loop_footer
      %s15 = sadd.s32 1, %s11
    $region7: #{block_linear.1} parent=1 // loop_footer_branch
      %10 = sbr.rel target = $region3
    $region8: #{block_linear.1} parent=1 // loop_exit
      _
    %459 = vsyncpa [#allocation4], 1
    %s460 = scalar_lea.sflag [#allocation4], 1
    %461 = vsyncpa %s460, 1

</llo_original>
